<compile_context>
chip_gen: v7x
topology: tpu7x:2x2x1
jax: 0.10.0
libtpu: 0.0.40
codegen_flags: <defaults>
</compile_context>

<pallas_src>
import jax
import jax.numpy as jnp
from jax.experimental import pallas as pl
from jax.experimental.pallas import tpu as pltpu


def _round_up(x, m):
    return ((x + m - 1) // m) * m


# ----------------------------- Pallas kernel ------------------------------ #

def _inverse_conv_kernel(g_ref, w_ref, b_ref, o_ref):
    """grid = (n_tiles, k_tiles); axis 1 (k) is the contraction reduction.

    g_ref : (TILE_N, TILE_K)     bf16  gathered + Kvol-folded features
    w_ref : (TILE_K, C_out_pad)  bf16  folded weights
    b_ref : (1, C_out_pad)       f32   bias
    o_ref : (TILE_N, C_out_pad)  f32   output (VMEM-resident accumulator over k)
    """
    k = pl.program_id(1)

    @pl.when(k == 0)
    def _():
        o_ref[...] = jnp.zeros_like(o_ref)

    o_ref[...] += jnp.dot(g_ref[...], w_ref[...],
                          preferred_element_type=jnp.float32)

    @pl.when(k == pl.num_programs(1) - 1)
    def _():
        o_ref[...] += b_ref[...]


def _sparse_inverse_conv_matmul(g, w, b, *, tile_n, tile_k):
    """g: (N_pad, K_pad) bf16, w: (K_pad, C_out_pad) bf16, b: (1, C_out_pad) f32."""
    N_pad, K_pad = g.shape
    C_out_pad = w.shape[-1]
    num_n = N_pad // tile_n
    num_k = K_pad // tile_k

    # Explicit scoped-VMEM budget (v5e default is only 16 MiB; v7x has 64 MiB
    # physical per TC) — double-buffered inputs/outputs + bias, with headroom.
    vmem_bytes = (2 * tile_n * tile_k * 2        # gathered tiles (bf16, 2 bufs)
                  + 2 * tile_k * C_out_pad * 2   # weight tiles
                  + 2 * tile_n * C_out_pad * 4   # output tiles (f32)
                  + C_out_pad * 4)               # bias
    vmem_limit = min(max(2 * vmem_bytes, 16 * 1024 * 1024), 48 * 1024 * 1024)

    return pl.pallas_call(
        _inverse_conv_kernel,
        out_shape=jax.ShapeDtypeStruct((N_pad, C_out_pad), jnp.float32),
        grid_spec=pltpu.PrefetchScalarGridSpec(
            num_scalar_prefetch=0,
            grid=(num_n, num_k),
            in_specs=[
                pl.BlockSpec((tile_n, tile_k), lambda n, k: (n, k)),
                pl.BlockSpec((tile_k, C_out_pad), lambda n, k: (k, 0)),
                pl.BlockSpec((1, C_out_pad), lambda n, k: (0, 0)),
            ],
            out_specs=pl.BlockSpec((tile_n, C_out_pad), lambda n, k: (n, 0)),
        ),
        compiler_params=pltpu.CompilerParams(
            dimension_semantics=("parallel", "arbitrary"),
            vmem_limit_bytes=vmem_limit),
    )(g, w, b)


# ------------------------------- Module glue ------------------------------ #

class SparseInverseConv3dPallas:
    """JAX/Pallas port of SparseInverseConv3d (torchsparse backend, stride=1)."""

    def __init__(self, in_channels, out_channels, kernel_size,
                 stride=1, dilation=1, bias=True, key=None):
        assert stride == 1, "only the layout-preserving (stride=1) path is implemented"
        # TODO(synk): torchsparse's indice_key-based coordinate recovery for
        # stride>1 (de-downsampling) is index bookkeeping outside the compute
        # path and is not reproduced here.
        self.in_channels = in_channels
        self.out_channels = out_channels
        self.kernel_size = kernel_size
        self.dilation = dilation
        self.kvol = kernel_size ** 3

        k_w, k_b = jax.random.split(key)
        fan_in = in_channels * self.kvol
        bound = 1.0 / jnp.sqrt(jnp.float32(fan_in))
        # weight layout: (Kvol, C_in, C_out)  (torchsparse convention)
        self.weight = jax.random.uniform(
            k_w, (self.kvol, in_channels, out_channels),
            jnp.float32, -bound, bound)
        if bias:
            self.bias = jax.random.uniform(
                k_b, (1, out_channels), jnp.float32, -bound, bound)
        else:
            self.bias = jnp.zeros((1, out_channels), jnp.float32)

        # Centered kernel offsets, dilation applied.
        r = kernel_size // 2
        ax = (jnp.arange(kernel_size) - r) * dilation
        ox, oy, oz = jnp.meshgrid(ax, ax, ax, indexing="ij")
        self.offsets = jnp.stack(
            [ox.ravel(), oy.ravel(), oz.ravel()], axis=-1).astype(jnp.int32)

    # ---- glue: kernel map via sorted keys + searchsorted (O(N Kvol log N)) --- #
    def _kernel_map(self, coords, spatial_size):
        S = spatial_size

        def pack(b, x, y, z):
            return ((b * S + x) * S + y) * S + z

        key = pack(coords[:, 0], coords[:, 1], coords[:, 2], coords[:, 3])
        order = jnp.argsort(key)
        skey = key[order]

        # transposed conv: flipped offsets -> neighbor at p - delta
        nbr = coords[:, None, 1:] - self.offsets[None, :, :]        # (N, Kvol, 3)
        valid = jnp.all((nbr >= 0) & (nbr < S), axis=-1)             # (N, Kvol)
        qkey = pack(coords[:, None, 0], nbr[..., 0], nbr[..., 1], nbr[..., 2])

        pos = jnp.searchsorted(skey, qkey)
        pos = jnp.clip(pos, 0, key.shape[0] - 1)
        found = valid & (skey[pos] == qkey)
        idx = jnp.where(found, order[pos], 0)
        return idx, found

    def __call__(self, coords, feats, spatial_size, *, tile_n=512, tile_k=256):
        N, C_in = feats.shape
        C_out = self.out_channels
        K_total = self.kvol * C_in

        idx, found = self._kernel_map(coords, spatial_size)

        # Gather neighbor features; zero where no neighbor voxel exists, then
        # fold the kernel volume into the contraction dimension.
        # TODO(synk): fuse this gather into the Pallas kernel (scalar-prefetched
        # index tables + in-VMEM row gather) to avoid the Kvol x HBM blow-up of
        # the materialized gathered tensor.
        g = feats[idx]                                              # (N, Kvol, C_in)
        g = jnp.where(found[..., None], g, jnp.float32(0))
        g = g.reshape(N, K_total)                                   # (N, Kvol*C_in)

        # Padding / tiling: lane-dense output channels, 128-multiple contraction,
        # 16-row-multiple voxel tiles (bf16 sublane packing).
        if N < tile_n:
            tile_n = max(16, _round_up(N, 16))
        N_pad = _round_up(N, tile_n)
        K_pad = _round_up(K_total, tile_k)
        C_out_pad = _round_up(C_out, 128)

        g_p = jnp.zeros((N_pad, K_pad), jnp.bfloat16)
        g_p = g_p.at[:N, :K_total].set(g.astype(jnp.bfloat16))
        w_p = jnp.zeros((K_pad, C_out_pad), jnp.bfloat16)
        w_p = w_p.at[:K_total, :C_out].set(
            self.weight.reshape(K_total, C_out).astype(jnp.bfloat16))
        b_p = jnp.zeros((1, C_out_pad), jnp.float32)
        b_p = b_p.at[:, :C_out].set(self.bias)

        out = _sparse_inverse_conv_matmul(g_p, w_p, b_p,
                                          tile_n=tile_n, tile_k=tile_k)
        return out[:N, :C_out]


# --------------------------------- Driver --------------------------------- #

if __name__ == "__main__":
    key = jax.random.PRNGKey(0)
    k_coord, k_feat, k_param = jax.random.split(key, 3)

    B, S = 2, 8                 # batch, spatial extent per axis
    C_in, C_out, K = 8, 16, 3   # channels, kernel size
    n_per_batch = 40            # active voxels per batch item

    # deterministic unique sparse voxel coordinates per batch item
    coords_list = []
    for b in range(B):
        flat = jax.random.choice(jax.random.fold_in(k_coord, b),
                                 S * S * S, (n_per_batch,), replace=False)
        x = flat // (S * S)
        y = (flat // S) % S
        z = flat % S
        bcol = jnp.full((n_per_batch,), b, jnp.int32)
        coords_list.append(
            jnp.stack([bcol, x, y, z], axis=1).astype(jnp.int32))
    coords = jnp.concatenate(coords_list, axis=0)      # (N, 4)
    N = coords.shape[0]
    feats = jax.random.normal(k_feat, (N, C_in), jnp.float32)

    module = SparseInverseConv3dPallas(C_in, C_out, K, stride=1,
                                       dilation=1, bias=True, key=k_param)

    out = module(coords, feats, S)
    out = jax.block_until_ready(out)

    # pure-JAX f32 reference for a correctness sanity check (kernel uses bf16
    # inputs with f32 accumulation, so compare with a bf16-level tolerance).
    idx_ref, found_ref = module._kernel_map(coords, S)
    g_ref = feats[idx_ref]
    g_ref = jnp.where(found_ref[..., None], g_ref, jnp.float32(0))
    ref = jnp.einsum("nkc,kco->no", g_ref, module.weight) + module.bias

    assert out.shape == (N, C_out)
    assert jnp.allclose(out, ref, atol=5e-2, rtol=5e-2), "mismatch vs reference"

    print("KERNEL_OK")
</pallas_src>

<mosaic_0001>
module attributes {stable_mosaic.version = 11 : i64} {
  func.func @_inverse_conv_kernel(%arg0: i32, %arg1: i32, %arg2: memref<80x256xbf16, #tpu.memory_space<vmem>>, %arg3: memref<256x128xbf16, #tpu.memory_space<vmem>>, %arg4: memref<1x128xf32, #tpu.memory_space<vmem>>, %arg5: memref<80x128xf32, #tpu.memory_space<vmem>>) attributes {dimension_semantics = [#tpu.dimension_semantics<parallel>, #tpu.dimension_semantics<arbitrary>], iteration_bounds = array<i64: 1, 1>, scalar_prefetch = 0 : i64, scratch_operands = 0 : i64, tpu.core_type = #tpu.core_type<tc>, window_params = [{transform_indices = @transform_0, window_bounds = array<i64: 80, 256>}, {transform_indices = @transform_1, window_bounds = array<i64: 256, 128>}, {pipeline_mode = #tpu.pipeline_mode<synchronous>, transform_indices = @transform_2, window_bounds = array<i64: 1, 128>}, {transform_indices = @transform_3, window_bounds = array<i64: 80, 128>}]} {
    %c0_i32 = arith.constant 0 : i32
    %0 = arith.cmpi eq, %arg1, %c0_i32 : i32
    %1 = arith.extui %0 : i1 to i32
    %c0_i32_0 = arith.constant 0 : i32
    %2 = arith.cmpi ne, %1, %c0_i32_0 : i32
    scf.if %2 {
      %cst_10 = arith.constant 0.000000e+00 : f32
      %12 = vector.broadcast %cst_10 : f32 to vector<80x128xf32>
      %c0_11 = arith.constant 0 : index
      %c0_12 = arith.constant 0 : index
      %13 = vector.load %arg5[%c0_11, %c0_12] : memref<80x128xf32, #tpu.memory_space<vmem>>, vector<80x128xf32>
      tpu.vector_store %arg5[%c0_11, %c0_12], %12 {strides = array<i32>} : memref<80x128xf32, #tpu.memory_space<vmem>>, vector<80x128xf32>,
    } else {
    }
    %c0 = arith.constant 0 : index
    %c0_1 = arith.constant 0 : index
    %3 = vector.load %arg5[%c0, %c0_1] : memref<80x128xf32, #tpu.memory_space<vmem>>, vector<80x128xf32>
    %c0_2 = arith.constant 0 : index
    %c0_3 = arith.constant 0 : index
    %4 = vector.load %arg2[%c0_2, %c0_3] : memref<80x256xbf16, #tpu.memory_space<vmem>>, vector<80x256xbf16>
    %c0_4 = arith.constant 0 : index
    %c0_5 = arith.constant 0 : index
    %5 = vector.load %arg3[%c0_4, %c0_5] : memref<256x128xbf16, #tpu.memory_space<vmem>>, vector<256x128xbf16>
    %cst = arith.constant dense<0.000000e+00> : vector<80x128xf32>
    %6 = tpu.matmul %4, %5, %cst {dimension_numbers = #tpu.dot_dimension_numbers<[1], [0], [0], [1], [0, 0, 1, 1], [], []>} : vector<80x256xbf16>, vector<256x128xbf16>, vector<80x128xf32> -> vector<80x128xf32>
    %7 = arith.addf %3, %6 : vector<80x128xf32>
    %c0_6 = arith.constant 0 : index
    %c0_7 = arith.constant 0 : index
    %8 = vector.load %arg5[%c0_6, %c0_7] : memref<80x128xf32, #tpu.memory_space<vmem>>, vector<80x128xf32>
    tpu.vector_store %arg5[%c0_6, %c0_7], %7 {strides = array<i32>} : memref<80x128xf32, #tpu.memory_space<vmem>>, vector<80x128xf32>,
    %c0_i32_8 = arith.constant 0 : i32
    %9 = arith.cmpi eq, %arg1, %c0_i32_8 : i32
    %10 = arith.extui %9 : i1 to i32
    %c0_i32_9 = arith.constant 0 : i32
    %11 = arith.cmpi ne, %10, %c0_i32_9 : i32
    scf.if %11 {
      %c0_10 = arith.constant 0 : index
      %c0_11 = arith.constant 0 : index
      %12 = vector.load %arg5[%c0_10, %c0_11] : memref<80x128xf32, #tpu.memory_space<vmem>>, vector<80x128xf32>
      %c0_12 = arith.constant 0 : index
      %c0_13 = arith.constant 0 : index
      %13 = vector.load %arg4[%c0_12, %c0_13] : memref<1x128xf32, #tpu.memory_space<vmem>>, vector<1x128xf32>
      %14 = vector.broadcast %13 : vector<1x128xf32> to vector<80x128xf32>
      %15 = arith.addf %12, %14 : vector<80x128xf32>
      %c0_14 = arith.constant 0 : index
      %c0_15 = arith.constant 0 : index
      %16 = vector.load %arg5[%c0_14, %c0_15] : memref<80x128xf32, #tpu.memory_space<vmem>>, vector<80x128xf32>
      tpu.vector_store %arg5[%c0_14, %c0_15], %15 {strides = array<i32>} : memref<80x128xf32, #tpu.memory_space<vmem>>, vector<80x128xf32>,
    } else {
    }
    return
  }
  func.func @transform_0(%arg0: i32, %arg1: i32) -> (i32, i32) {
    %c0_i32 = arith.constant 0 : i32
    return %arg0, %arg1 : i32, i32
  }
  func.func @transform_1(%arg0: i32, %arg1: i32) -> (i32, i32) {
    %c0_i32 = arith.constant 0 : i32
    %c0_i32_0 = arith.constant 0 : i32
    return %arg1, %c0_i32 : i32, i32
  }
  func.func @transform_2(%arg0: i32, %arg1: i32) -> (i32, i32) {
    %c0_i32 = arith.constant 0 : i32
    %c0_i32_0 = arith.constant 0 : i32
    %c0_i32_1 = arith.constant 0 : i32
    return %c0_i32, %c0_i32_0 : i32, i32
  }
  func.func @transform_3(%arg0: i32, %arg1: i32) -> (i32, i32) {
    %c0_i32 = arith.constant 0 : i32
    %c0_i32_0 = arith.constant 0 : i32
    return %arg0, %c0_i32 : i32, i32
  }
}

</mosaic_0001>

<llo_original>
// kernel: tpu_custom_call.1
$region0: #{tpu_custom_call.1}
  #allocation0 [shape = 'u32[]', space=smem, size = 0x4, offset = 0x4, fixed_abs, tag = 'smem constant byte address 0x4 - core index']
  #allocation1 [shape = 'u32[144,128]{1,0:T(1,128)}', space=vmem, size = 0x12000, scoped, tag = 'internal scratch']
  %s0 = inlined_call_operand.hbm [shape: bf16[80,256], index: 0, kind: input, shape index: {}]
  %s1 = inlined_call_operand.hbm [shape: bf16[256,128], index: 1, kind: input, shape index: {}]
  %s2 = inlined_call_operand.vmem [shape: f32[1,128], index: 2, kind: input, shape index: {}]
  %s3 = inlined_call_operand.hbm [shape: f32[80,128], index: 3, kind: output, shape index: {}]
  %s4 = sld [smem:[#allocation0]]
  $region38: #{tpu_custom_call.1} parent=0
    _
  %s6 = ssub.s32 1, %s4
  %s7 = scalar_select 0, %s6, %s4
  $region1: #{tpu_custom_call.1} parent=0
    #allocation2 [shape = 'u8[40960]{0}', space=vmem, size = 0xa000, scoped, tag = 'input window, operand 0, single buffered']
    #allocation3 [shape = 's32[1]{0}', space=sflag, size = 0x4, scoped, tag = 'scoped memory for tpu_custom_call.1']
    #allocation4 [shape = 's32[1]{0}', space=sflag, size = 0x4, scoped, tag = 'scoped memory for tpu_custom_call.1']
    #allocation5 [shape = 'u8[65536]{0}', space=vmem, size = 0x10000, scoped, tag = 'input window, operand 1, single buffered']
    #allocation6 [shape = 's32[1]{0}', space=sflag, size = 0x4, scoped, tag = 'scoped memory for tpu_custom_call.1']
    #allocation7 [shape = 'u8[40960]{0}', space=vmem, size = 0xa000, scoped, tag = 'output window, operand 0, single buffered']
    %8 = vsyncpa [#allocation3], 0
    %9 = vsyncpa [#allocation6], 0
    %10 = vsyncpa [#allocation4], 0
    // Predicated region
    $region2: #{tpu_custom_call.1} parent=1 // pred_check
      _
    $region3: #{tpu_custom_call.1} parent=1 // pred_check_branch
      %12 = sbr.rel (0) target = $region5
    $region4: #{tpu_custom_call.1} parent=1 // pred_region
      %s14 = ssub.s32 1280, 1280
      %15 = vsyncadd [#allocation3], %s14
      %s16 = sshll.u32 [#allocation2], 4
      %s17 = int_to_ptr.vmem [resolvable:$true] %s16
      %22 = dma.hbm_to_vmem [thread:$0]  %s0, 1280, %s17, [#allocation3], 128, 128, 8
    $region5: #{tpu_custom_call.1} parent=1 // pred_fallthru
      _
    // Predicated region
    $region6: #{tpu_custom_call.1} parent=1 // pred_check
      _
    $region7: #{tpu_custom_call.1} parent=1 // pred_check_branch
      %24 = sbr.rel (0) target = $region9
    $region8: #{tpu_custom_call.1} parent=1 // pred_region
      %s26 = ssub.s32 2048, 2048
      %27 = vsyncadd [#allocation6], %s26
      %s28 = sshll.u32 [#allocation5], 4
      %s29 = int_to_ptr.vmem [resolvable:$true] %s28
      %34 = dma.hbm_to_vmem [thread:$0]  %s1, 2048, %s29, [#allocation6], 64, 64, 4
    $region9: #{tpu_custom_call.1} parent=1 // pred_fallthru
      _
    // Predicated region
    $region10: #{tpu_custom_call.1} parent=1 // pred_check
      _
    $region11: #{tpu_custom_call.1} parent=1 // pred_check_branch
      %36 = sbr.rel (0) target = $region13
    $region12: #{tpu_custom_call.1} parent=1 // pred_region
      _
    $region13: #{tpu_custom_call.1} parent=1 // pred_fallthru
      _
    // Predicated region
    $region14: #{tpu_custom_call.1} parent=1 // pred_check
      _
    $region15: #{tpu_custom_call.1} parent=1 // pred_check_branch
      %38 = sbr.rel (0) target = $region17
    $region16: #{tpu_custom_call.1} parent=1 // pred_region
      %39 = dma.done [#allocation3], 1280
    $region17: #{tpu_custom_call.1} parent=1 // pred_fallthru
      _
    // Predicated region
    $region18: #{tpu_custom_call.1} parent=1 // pred_check
      _
    $region19: #{tpu_custom_call.1} parent=1 // pred_check_branch
      %41 = sbr.rel (0) target = $region21
    $region20: #{tpu_custom_call.1} parent=1 // pred_region
      %42 = dma.done [#allocation6], 2048
    $region21: #{tpu_custom_call.1} parent=1 // pred_fallthru
      _
    %p44 = scmp.eq.s32.totalorder 0, 0
    // Predicated region
    $region22: #{tpu_custom_call.1} parent=1 // pred_check
      %p45 = pneg %p44
    $region23: #{tpu_custom_call.1} parent=1 // pred_check_branch
      %47 = sbr.rel (%p45) target = $region25
    $region24: #{tpu_custom_call.1} parent=1 // pred_region
      %48 = vst [vmem:[#allocation7] sm:$0xff] 0.0
      %49 = vst [vmem:[#allocation7 + $0x8] sm:$0xff] 0.0
      %50 = vst [vmem:[#allocation7 + $0x10] sm:$0xff] 0.0
      %51 = vst [vmem:[#allocation7 + $0x18] sm:$0xff] 0.0
      %52 = vst [vmem:[#allocation7 + $0x20] sm:$0xff] 0.0
      %53 = vst [vmem:[#allocation7 + $0x28] sm:$0xff] 0.0
      %54 = vst [vmem:[#allocation7 + $0x30] sm:$0xff] 0.0
      %55 = vst [vmem:[#allocation7 + $0x38] sm:$0xff] 0.0
      %56 = vst [vmem:[#allocation7 + $0x40] sm:$0xff] 0.0
      %57 = vst [vmem:[#allocation7 + $0x48] sm:$0xff] 0.0
    $region25: #{tpu_custom_call.1} parent=1 // pred_fallthru
      _
    %v58 = vld [vmem:[#allocation7] sm:$0xff]
    %v59 = vld [vmem:[#allocation7 + $0x8] sm:$0xff]
    %v60 = vld [vmem:[#allocation7 + $0x10] sm:$0xff]
    %v61 = vld [vmem:[#allocation7 + $0x18] sm:$0xff]
    %v62 = vld [vmem:[#allocation7 + $0x20] sm:$0xff]
    %v63 = vld [vmem:[#allocation7 + $0x28] sm:$0xff]
    %v64 = vld [vmem:[#allocation7 + $0x30] sm:$0xff]
    %v65 = vld [vmem:[#allocation7 + $0x38] sm:$0xff]
    %v66 = vld [vmem:[#allocation7 + $0x40] sm:$0xff]
    %v67 = vld [vmem:[#allocation7 + $0x48] sm:$0xff]
    %v68 = vld [vmem:[#allocation2] sm:$0xff]
    %v69 = vld [vmem:[#allocation2 + $0x8] sm:$0xff]
    %v70 = vld [vmem:[#allocation2 + $0x10] sm:$0xff]
    %v71 = vld [vmem:[#allocation2 + $0x18] sm:$0xff]
    %v72 = vld [vmem:[#allocation2 + $0x20] sm:$0xff]
    %v73 = vld [vmem:[#allocation2 + $0x28] sm:$0xff]
    %v74 = vld [vmem:[#allocation2 + $0x30] sm:$0xff]
    %v75 = vld [vmem:[#allocation2 + $0x38] sm:$0xff]
    %v76 = vld [vmem:[#allocation2 + $0x40] sm:$0xff]
    %v77 = vld [vmem:[#allocation2 + $0x48] sm:$0xff]
    %v78 = vld [vmem:[#allocation5] sm:$0xf]
    %v79 = vld [vmem:[#allocation5 + $0x4] sm:$0xf]
    %v80 = vld [vmem:[#allocation5 + $0x8] sm:$0xf]
    %v81 = vld [vmem:[#allocation5 + $0xc] sm:$0xf]
    %v82 = vld [vmem:[#allocation5 + $0x10] sm:$0xf]
    %v83 = vld [vmem:[#allocation5 + $0x14] sm:$0xf]
    %v84 = vld [vmem:[#allocation5 + $0x18] sm:$0xf]
    %v85 = vld [vmem:[#allocation5 + $0x1c] sm:$0xf]
    %v86 = vld [vmem:[#allocation5 + $0x20] sm:$0xf]
    %v87 = vld [vmem:[#allocation5 + $0x24] sm:$0xf]
    %v88 = vld [vmem:[#allocation5 + $0x28] sm:$0xf]
    %v89 = vld [vmem:[#allocation5 + $0x2c] sm:$0xf]
    %v90 = vld [vmem:[#allocation5 + $0x30] sm:$0xf]
    %v91 = vld [vmem:[#allocation5 + $0x34] sm:$0xf]
    %v92 = vld [vmem:[#allocation5 + $0x38] sm:$0xf]
    %v93 = vld [vmem:[#allocation5 + $0x3c] sm:$0xf]
    %v94 = vld [vmem:[#allocation5 + $0x40] sm:$0xf]
    %v95 = vld [vmem:[#allocation5 + $0x44] sm:$0xf]
    %v96 = vld [vmem:[#allocation5 + $0x48] sm:$0xf]
    %v97 = vld [vmem:[#allocation5 + $0x4c] sm:$0xf]
    %v98 = vld [vmem:[#allocation5 + $0x50] sm:$0xf]
    %v99 = vld [vmem:[#allocation5 + $0x54] sm:$0xf]
    %v100 = vld [vmem:[#allocation5 + $0x58] sm:$0xf]
    %v101 = vld [vmem:[#allocation5 + $0x5c] sm:$0xf]
    %v102 = vld [vmem:[#allocation5 + $0x60] sm:$0xf]
    %v103 = vld [vmem:[#allocation5 + $0x64] sm:$0xf]
    %v104 = vld [vmem:[#allocation5 + $0x68] sm:$0xf]
    %v105 = vld [vmem:[#allocation5 + $0x6c] sm:$0xf]
    %v106 = vld [vmem:[#allocation5 + $0x70] sm:$0xf]
    %v107 = vld [vmem:[#allocation5 + $0x74] sm:$0xf]
    %v108 = vld [vmem:[#allocation5 + $0x78] sm:$0xf]
    %v109 = vld [vmem:[#allocation5 + $0x7c] sm:$0xf]
    %v120 = vunpack.c.l.b16 %v68
    %v121 = vunpack.c.h.b16 %v68
    %v122 = vunpack.c.l.b16 %v69
    %v123 = vunpack.c.h.b16 %v69
    %v124 = vunpack.c.l.b16 %v70
    %v125 = vunpack.c.h.b16 %v70
    %v126 = vunpack.c.l.b16 %v71
    %v127 = vunpack.c.h.b16 %v71
    %v128 = vunpack.c.l.b16 %v72
    %v129 = vunpack.c.h.b16 %v72
    %v130 = vunpack.c.l.b16 %v73
    %v131 = vunpack.c.h.b16 %v73
    %v132 = vunpack.c.l.b16 %v74
    %v133 = vunpack.c.h.b16 %v74
    %v134 = vunpack.c.l.b16 %v75
    %v135 = vunpack.c.h.b16 %v75
    %v136 = vunpack.c.l.b16 %v76
    %v137 = vunpack.c.h.b16 %v76
    %v138 = vunpack.c.l.b16 %v77
    %v139 = vunpack.c.h.b16 %v77
    %v140 = vpack.c.b16 %v122, %v120
    %v141 = vpack.c.b16 %v123, %v121
    %v142 = vpack.c.b16 %v126, %v124
    %v143 = vpack.c.b16 %v127, %v125
    %v144 = vpack.c.b16 %v130, %v128
    %v145 = vpack.c.b16 %v131, %v129
    %v146 = vpack.c.b16 %v134, %v132
    %v147 = vpack.c.b16 %v135, %v133
    %v148 = vpack.c.b16 %v138, %v136
    %v149 = vpack.c.b16 %v139, %v137
    %v192 = vunpack.c.l.b16 %v78
    %v193 = vunpack.c.l.b16 %v79
    %v194 = vunpack.c.l.b16 %v80
    %v195 = vunpack.c.l.b16 %v81
    %v196 = vunpack.c.l.b16 %v82
    %v197 = vunpack.c.l.b16 %v83
    %v198 = vunpack.c.l.b16 %v84
    %v199 = vunpack.c.l.b16 %v85
    %v200 = vunpack.c.l.b16 %v86
    %v201 = vunpack.c.l.b16 %v87
    %v202 = vunpack.c.l.b16 %v88
    %v203 = vunpack.c.l.b16 %v89
    %v204 = vunpack.c.l.b16 %v90
    %v205 = vunpack.c.l.b16 %v91
    %v206 = vunpack.c.l.b16 %v92
    %v207 = vunpack.c.l.b16 %v93
    %v208 = vunpack.c.l.b16 %v94
    %v209 = vunpack.c.l.b16 %v95
    %v210 = vunpack.c.l.b16 %v96
    %v211 = vunpack.c.l.b16 %v97
    %v212 = vunpack.c.l.b16 %v98
    %v213 = vunpack.c.l.b16 %v99
    %v214 = vunpack.c.l.b16 %v100
    %v215 = vunpack.c.l.b16 %v101
    %v216 = vunpack.c.l.b16 %v102
    %v217 = vunpack.c.l.b16 %v103
    %v218 = vunpack.c.l.b16 %v104
    %v219 = vunpack.c.l.b16 %v105
    %v220 = vunpack.c.l.b16 %v106
    %v221 = vunpack.c.l.b16 %v107
    %v222 = vunpack.c.l.b16 %v108
    %v223 = vunpack.c.l.b16 %v109
    %v224 = vpack.c.b16 %v193, %v192
    %v225 = vpack.c.b16 %v195, %v194
    %v226 = vpack.c.b16 %v197, %v196
    %v227 = vpack.c.b16 %v199, %v198
    %v228 = vpack.c.b16 %v201, %v200
    %v229 = vpack.c.b16 %v203, %v202
    %v230 = vpack.c.b16 %v205, %v204
    %v231 = vpack.c.b16 %v207, %v206
    %v232 = vpack.c.b16 %v209, %v208
    %v233 = vpack.c.b16 %v211, %v210
    %v234 = vpack.c.b16 %v213, %v212
    %v235 = vpack.c.b16 %v215, %v214
    %v236 = vpack.c.b16 %v217, %v216
    %v237 = vpack.c.b16 %v219, %v218
    %v238 = vpack.c.b16 %v221, %v220
    %v239 = vpack.c.b16 %v223, %v222
    %256 = vmatprep.subr.bf16.mxu0 0
    %257 = vmatpush1.bf16.msra.mxu0 %v224
    %258 = vmatprep.subr.bf16.mxu0 0
    %259 = vmatpush1.bf16.msra.mxu0 %v225
    %260 = vmatprep.subr.bf16.mxu0 0
    %261 = vmatpush1.bf16.msra.mxu0 %v226
    %262 = vmatprep.subr.bf16.mxu0 0
    %263 = vmatpush1.bf16.msra.mxu0 %v227
    %264 = vmatprep.subr.bf16.mxu0 0
    %265 = vmatpush1.bf16.msra.mxu0 %v228
    %266 = vmatprep.subr.bf16.mxu0 0
    %267 = vmatpush1.bf16.msra.mxu0 %v229
    %268 = vmatprep.subr.bf16.mxu0 0
    %269 = vmatpush1.bf16.msra.mxu0 %v230
    %270 = vmatprep.subr.bf16.mxu0 0
    %271 = vmatpush1.bf16.msra.mxu0 %v231
    %272 = vmatprep.subr.bf16.mxu0 0
    %273 = vmatpush1.bf16.msra.mxu0 %v232
    %274 = vmatprep.subr.bf16.mxu0 0
    %275 = vmatpush1.bf16.msra.mxu0 %v233
    %276 = vmatprep.subr.bf16.mxu0 0
    %277 = vmatpush1.bf16.msra.mxu0 %v234
    %278 = vmatprep.subr.bf16.mxu0 0
    %279 = vmatpush1.bf16.msra.mxu0 %v235
    %280 = vmatprep.subr.bf16.mxu0 0
    %281 = vmatpush1.bf16.msra.mxu0 %v236
    %282 = vmatprep.subr.bf16.mxu0 0
    %283 = vmatpush1.bf16.msra.mxu0 %v237
    %284 = vmatprep.subr.bf16.mxu0 0
    %285 = vmatpush1.bf16.msra.mxu0 %v238
    %286 = vmatprep.subr.bf16.mxu0 0
    %287 = vmatpush1.bf16.msra.mxu0 %v239
    %288 = vmatprep.mubr.bf16.mxu0 %v141
    %289 = vmatmul.mubr.bf16.gmra.mrb[0].mxu0 %v140
    %v290 = vpop.f32.mrb[0].mxu0
    %v291 = vadd.f32 0.0, %v290
    %v292 = vpop.f32.mrb[0].mxu0
    %v293 = vpop.f32.mrb[0].mxu0
    %v294 = vadd.f32 0.0, %v293
    %v295 = vpop.f32.mrb[0].mxu0
    %296 = vmatprep.mubr.bf16.mxu0 %v143
    %297 = vmatmul.mubr.bf16.gmra.mrb[0].mxu0 %v142
    %v298 = vpop.f32.mrb[0].mxu0
    %v299 = vadd.f32 0.0, %v298
    %v300 = vpop.f32.mrb[0].mxu0
    %v301 = vpop.f32.mrb[0].mxu0
    %v302 = vadd.f32 0.0, %v301
    %v303 = vpop.f32.mrb[0].mxu0
    %304 = vmatprep.mubr.bf16.mxu0 %v145
    %305 = vmatmul.mubr.bf16.gmra.mrb[0].mxu0 %v144
    %v306 = vpop.f32.mrb[0].mxu0
    %v307 = vadd.f32 0.0, %v306
    %v308 = vpop.f32.mrb[0].mxu0
    %v309 = vpop.f32.mrb[0].mxu0
    %v310 = vadd.f32 0.0, %v309
    %v311 = vpop.f32.mrb[0].mxu0
    %312 = vmatprep.mubr.bf16.mxu0 %v147
    %313 = vmatmul.mubr.bf16.gmra.mrb[0].mxu0 %v146
    %v314 = vpop.f32.mrb[0].mxu0
    %v315 = vadd.f32 0.0, %v314
    %v316 = vpop.f32.mrb[0].mxu0
    %v317 = vpop.f32.mrb[0].mxu0
    %v318 = vadd.f32 0.0, %v317
    %v319 = vpop.f32.mrb[0].mxu0
    %320 = vmatprep.mubr.bf16.mxu0 %v149
    %321 = vmatmul.mubr.bf16.gmra.mrb[0].mxu0 %v148
    %v322 = vpop.f32.mrb[0].mxu0
    %v323 = vadd.f32 0.0, %v322
    %v324 = vpop.f32.mrb[0].mxu0
    %v325 = vpop.f32.mrb[0].mxu0
    %v326 = vadd.f32 0.0, %v325
    %v327 = vpop.f32.mrb[0].mxu0
    %328 = vdwg.mxu0
    %v329 = vadd.f32 %v58, %v291
    %v330 = vadd.f32 %v59, %v294
    %v331 = vadd.f32 %v60, %v299
    %v332 = vadd.f32 %v61, %v302
    %v333 = vadd.f32 %v62, %v307
    %v334 = vadd.f32 %v63, %v310
    %v335 = vadd.f32 %v64, %v315
    %v336 = vadd.f32 %v65, %v318
    %v337 = vadd.f32 %v66, %v323
    %v338 = vadd.f32 %v67, %v326
    %339 = vst [vmem:[#allocation7] sm:$0xff] %v329
    %340 = vst [vmem:[#allocation7 + $0x8] sm:$0xff] %v330
    %341 = vst [vmem:[#allocation7 + $0x10] sm:$0xff] %v331
    %342 = vst [vmem:[#allocation7 + $0x18] sm:$0xff] %v332
    %343 = vst [vmem:[#allocation7 + $0x20] sm:$0xff] %v333
    %344 = vst [vmem:[#allocation7 + $0x28] sm:$0xff] %v334
    %345 = vst [vmem:[#allocation7 + $0x30] sm:$0xff] %v335
    %346 = vst [vmem:[#allocation7 + $0x38] sm:$0xff] %v336
    %347 = vst [vmem:[#allocation7 + $0x40] sm:$0xff] %v337
    %348 = vst [vmem:[#allocation7 + $0x48] sm:$0xff] %v338
    // Predicated region
    $region26: #{tpu_custom_call.1} parent=1 // pred_check
      %p349 = pneg %p44
    $region27: #{tpu_custom_call.1} parent=1 // pred_check_branch
      %351 = sbr.rel (%p349) target = $region29
    $region28: #{tpu_custom_call.1} parent=1 // pred_region
      %v352 = vld [vmem:[#allocation7] sm:$0xff]
      %v353 = vld [vmem:[#allocation7 + $0x8] sm:$0xff]
      %v354 = vld [vmem:[#allocation7 + $0x10] sm:$0xff]
      %v355 = vld [vmem:[#allocation7 + $0x18] sm:$0xff]
      %v356 = vld [vmem:[#allocation7 + $0x20] sm:$0xff]
      %v357 = vld [vmem:[#allocation7 + $0x28] sm:$0xff]
      %v358 = vld [vmem:[#allocation7 + $0x30] sm:$0xff]
      %v359 = vld [vmem:[#allocation7 + $0x38] sm:$0xff]
      %v360 = vld [vmem:[#allocation7 + $0x40] sm:$0xff]
      %v361 = vld [vmem:[#allocation7 + $0x48] sm:$0xff]
      %v362 = vld [vmem:[%s2] sm:$0x1]
      %v364 = vlaneseq
      %v365 = vshrl.u32 %v364, 7
      %v366 = vsub.s32 0, %v365
      %v367 = vrot.slane %v362, %v366
      %v369 = vadd.f32 %v352, %v367
      %v370 = vadd.f32 %v353, %v367
      %v371 = vadd.f32 %v354, %v367
      %v372 = vadd.f32 %v355, %v367
      %v373 = vadd.f32 %v356, %v367
      %v374 = vadd.f32 %v357, %v367
      %v375 = vadd.f32 %v358, %v367
      %v376 = vadd.f32 %v359, %v367
      %v377 = vadd.f32 %v360, %v367
      %v378 = vadd.f32 %v361, %v367
      %379 = vst [vmem:[#allocation7] sm:$0xff] %v369
      %380 = vst [vmem:[#allocation7 + $0x8] sm:$0xff] %v370
      %381 = vst [vmem:[#allocation7 + $0x10] sm:$0xff] %v371
      %382 = vst [vmem:[#allocation7 + $0x18] sm:$0xff] %v372
      %383 = vst [vmem:[#allocation7 + $0x20] sm:$0xff] %v373
      %384 = vst [vmem:[#allocation7 + $0x28] sm:$0xff] %v374
      %385 = vst [vmem:[#allocation7 + $0x30] sm:$0xff] %v375
      %386 = vst [vmem:[#allocation7 + $0x38] sm:$0xff] %v376
      %387 = vst [vmem:[#allocation7 + $0x40] sm:$0xff] %v377
      %388 = vst [vmem:[#allocation7 + $0x48] sm:$0xff] %v378
    $region29: #{tpu_custom_call.1} parent=1 // pred_fallthru
      _
    // Predicated region
    $region30: #{tpu_custom_call.1} parent=1 // pred_check
      _
    $region31: #{tpu_custom_call.1} parent=1 // pred_check_branch
      %390 = sbr.rel (0) target = $region33
    $region32: #{tpu_custom_call.1} parent=1 // pred_region
      %s392 = ssub.s32 1280, 1280
      %393 = vsyncadd [#allocation4], %s392
      %s394 = sshll.u32 [#allocation7], 4
      %s395 = int_to_ptr.vmem [resolvable:$true] %s394
      %400 = dma.vmem_to_hbm [thread:$0]  %s395, 1280, %s3, [#allocation4], 128, 128, 8
    $region33: #{tpu_custom_call.1} parent=1 // pred_fallthru
      _
    // Predicated region
    $region34: #{tpu_custom_call.1} parent=1 // pred_check
      _
    $region35: #{tpu_custom_call.1} parent=1 // pred_check_branch
      %402 = sbr.rel (0) target = $region37
    $region36: #{tpu_custom_call.1} parent=1 // pred_region
      %403 = dma.done [#allocation4], 1280
    $region37: #{tpu_custom_call.1} parent=1 // pred_fallthru
      _
    %404 = vsyncpa [#allocation3], 1
    %405 = vsyncpa [#allocation6], 1
    %406 = vsyncpa [#allocation4], 1

</llo_original>
